<compile_context>
chip_gen: v5e
topology: v5e:2x2
jax: 0.10.0
libtpu: 0.0.40
codegen_flags: <defaults>
</compile_context>

<pallas_src>
import functools
import math

import jax
import jax.numpy as jnp
from jax.experimental import pallas as pl
from jax.experimental.pallas import tpu as pltpu

# ----------------------------- model config ---------------------------------
D_IN = 32
D_OUT = 32
NUM_HEADS = 4
NUM_KV_GROUPS = 2
HEAD_DIM = D_OUT // NUM_HEADS            # 8
GROUP_SIZE = NUM_HEADS // NUM_KV_GROUPS  # 2
KV_DIM = NUM_KV_GROUPS * HEAD_DIM        # 16
CONTEXT_LENGTH = 16
ROPE_BASE = 10000.0

BATCH = 2
SEQ = 8


# ------------------------- RoPE table (plain JAX glue) -----------------------
def precompute_rope_params(head_dim, theta_base=10000.0, context_length=4096):
    assert head_dim % 2 == 0
    inv_freq = 1.0 / theta_base ** (jnp.arange(0, head_dim, 2, dtype=jnp.float32) / head_dim)
    positions = jnp.arange(context_length, dtype=jnp.float32)
    angles = positions[:, None] * inv_freq[None, :]          # (ctx, hd/2)
    angles = jnp.concatenate([angles, angles], axis=1)        # (ctx, hd)
    return jnp.cos(angles), jnp.sin(angles)


# ------------------------------ Pallas kernel --------------------------------
def _rope_all_heads(t, cos, sin_signed, n_heads):
    """Vectorized RoPE over all heads packed along the lane dim.

    t:          (N, n_heads*HEAD_DIM) f32 (all heads packed in lanes)
    cos:        per-token cos table, tiled per head
    sin_signed: per-token sin table, tiled per head, with the [-x2, x1] rotation
                sign already folded in (first half of each head negated).
    One multiply-add pair covers every head; the only per-head work is building
    the half-swapped lane permutation with static slices + a single concat.
    """
    hd2 = HEAD_DIM // 2
    parts = []
    for h in range(n_heads):
        base = h * HEAD_DIM
        parts.append(t[:, base + hd2: base + HEAD_DIM])   # x2
        parts.append(t[:, base: base + hd2])              # x1
    swapped = jnp.concatenate(parts, axis=-1)
    return t * cos + swapped * sin_signed


def gqa_kernel(x_ref, wqkv_ref, wo_ref, cos_ref, sin_ref, o_ref, *, batch, seq):
    # Fused Q|K|V projection: one MXU matmul, bf16 operands, f32 accumulate.
    qkv = jnp.dot(x_ref[...], wqkv_ref[...],
                  preferred_element_type=jnp.float32)        # (B*T, D_OUT + 2*KV_DIM)
    q = qkv[:, :D_OUT]
    k = qkv[:, D_OUT:D_OUT + KV_DIM]
    v = qkv[:, D_OUT + KV_DIM:]

    cos = cos_ref[...]                                       # (B*T, D_OUT) f32
    sin = sin_ref[...]                                       # sign-folded sin

    # RoPE across all heads / KV groups at once (softmax scale folded into Wq).
    q_rot = _rope_all_heads(q, cos, sin, NUM_HEADS)
    k_rot = _rope_all_heads(k, cos[:, :KV_DIM], sin[:, :KV_DIM], NUM_KV_GROUPS)

    q3 = q_rot.reshape(batch, seq, D_OUT).astype(jnp.bfloat16)
    k3 = k_rot.reshape(batch, seq, KV_DIM).astype(jnp.bfloat16)
    v3 = v.reshape(batch, seq, KV_DIM).astype(jnp.bfloat16)

    # Stack heads along the einsum batch dim so scores need ONE batched MXU
    # matmul (instead of NUM_HEADS separate dispatches). K/V of a group are
    # simply re-sliced once per head that shares them.
    q_stack = jnp.concatenate(
        [q3[:, :, h * HEAD_DIM:(h + 1) * HEAD_DIM] for h in range(NUM_HEADS)],
        axis=0)                                              # (H*B, T, hd)
    k_stack = jnp.concatenate(
        [k3[:, :, (h // GROUP_SIZE) * HEAD_DIM:(h // GROUP_SIZE + 1) * HEAD_DIM]
         for h in range(NUM_HEADS)],
        axis=0)                                              # (H*B, T, hd)
    v_stack = jnp.concatenate(
        [v3[:, :, (h // GROUP_SIZE) * HEAD_DIM:(h // GROUP_SIZE + 1) * HEAD_DIM]
         for h in range(NUM_HEADS)],
        axis=0)                                              # (H*B, T, hd)

    scores = jnp.einsum('bqd,bkd->bqk', q_stack, k_stack,
                        preferred_element_type=jnp.float32)  # (H*B, T, T)

    # Causal mask shared by every (head, batch) block.
    row = jax.lax.broadcasted_iota(jnp.int32, scores.shape, 1)
    col = jax.lax.broadcasted_iota(jnp.int32, scores.shape, 2)
    scores = jnp.where(col > row, -jnp.inf, scores)

    # One numerically-stable softmax across all heads and batches (f32 math).
    m = jnp.max(scores, axis=-1, keepdims=True)
    e = jnp.exp(scores - m)
    denom = jnp.sum(e, axis=-1, keepdims=True)
    p = (e * pl.reciprocal(denom, approx=True)).astype(jnp.bfloat16)   # (H*B, T, T)

    # One batched context matmul; then repack heads along lanes for out_proj.
    ctx_all = jnp.einsum('bqk,bkd->bqd', p, v_stack,
                         preferred_element_type=jnp.float32)           # (H*B, T, hd)
    ctx = jnp.concatenate(
        [ctx_all[h * batch:(h + 1) * batch] for h in range(NUM_HEADS)],
        axis=-1)                                             # (B, T, D_OUT)

    ctx2d = ctx.reshape(batch * seq, D_OUT).astype(jnp.bfloat16)
    o_ref[...] = jnp.dot(ctx2d, wo_ref[...], preferred_element_type=jnp.float32)


# ------------------------------ wrapper --------------------------------------
@jax.jit
def gqa_forward(x, Wq, Wk, Wv, Wo, cos, sin):
    """x: (B, T, d_in); W* in torch nn.Linear layout (out_features, in_features)."""
    B, T, d_in = x.shape
    scale = 1.0 / math.sqrt(HEAD_DIM)
    hd2 = HEAD_DIM // 2

    # Fused, pre-transposed Q|K|V weight with the softmax scale folded into Wq.
    w_qkv = jnp.concatenate([Wq.T * scale, Wk.T, Wv.T], axis=1).astype(jnp.bfloat16)
    w_o = Wo.T.astype(jnp.bfloat16)

    # Per-token RoPE tables tiled across heads and batch (row r = b*T + t);
    # rotation sign folded into the sin table.
    cos_t = cos[:T].astype(jnp.float32)
    sin_t = sin[:T].astype(jnp.float32)
    sin_signed = jnp.concatenate([-sin_t[:, :hd2], sin_t[:, hd2:]], axis=1)
    cos_bt = jnp.tile(jnp.tile(cos_t, (1, NUM_HEADS)), (B, 1))        # (B*T, D_OUT)
    sin_bt = jnp.tile(jnp.tile(sin_signed, (1, NUM_HEADS)), (B, 1))   # (B*T, D_OUT)

    x2d = x.reshape(B * T, d_in).astype(jnp.bfloat16)

    kernel = functools.partial(gqa_kernel, batch=B, seq=T)
    out2d = pl.pallas_call(
        kernel,
        out_shape=jax.ShapeDtypeStruct((B * T, D_OUT), jnp.float32),
        grid=(1,),                                            # single step: batch folded into M
        in_specs=[
            pl.BlockSpec((B * T, d_in), lambda i: (0, 0)),
            pl.BlockSpec((d_in, D_OUT + 2 * KV_DIM), lambda i: (0, 0)),
            pl.BlockSpec((D_OUT, D_OUT), lambda i: (0, 0)),
            pl.BlockSpec((B * T, D_OUT), lambda i: (0, 0)),
            pl.BlockSpec((B * T, D_OUT), lambda i: (0, 0)),
        ],
        out_specs=pl.BlockSpec((B * T, D_OUT), lambda i: (0, 0)),
        compiler_params=pltpu.CompilerParams(
            dimension_semantics=("arbitrary",)),
    )(x2d, w_qkv, w_o, cos_bt, sin_bt)
    return out2d.reshape(B, T, D_OUT)


# ----------------------- pure-JAX reference (mirrors torch) ------------------
def compute_rope_ref(x, cos, sin):
    # x: (b, heads, seq, head_dim)
    b, nh, T, hd = x.shape
    x1 = x[..., : hd // 2]
    x2 = x[..., hd // 2:]
    c = cos[:T, :][None, None, :, :]
    s = sin[:T, :][None, None, :, :]
    rotated = jnp.concatenate([-x2, x1], axis=-1)
    return x * c + rotated * s


def gqa_reference(x, Wq, Wk, Wv, Wo, cos, sin):
    b, T, _ = x.shape
    q = x @ Wq.T
    k = x @ Wk.T
    v = x @ Wv.T
    q = q.reshape(b, T, NUM_HEADS, HEAD_DIM).transpose(0, 2, 1, 3)
    k = k.reshape(b, T, NUM_KV_GROUPS, HEAD_DIM).transpose(0, 2, 1, 3)
    v = v.reshape(b, T, NUM_KV_GROUPS, HEAD_DIM).transpose(0, 2, 1, 3)
    q = compute_rope_ref(q, cos, sin)
    k = compute_rope_ref(k, cos, sin)
    k = jnp.repeat(k, GROUP_SIZE, axis=1)
    v = jnp.repeat(v, GROUP_SIZE, axis=1)
    scores = q @ k.transpose(0, 1, 3, 2)
    mask = jnp.triu(jnp.ones((T, T), dtype=bool), k=1)
    scores = jnp.where(mask[None, None], -jnp.inf, scores)
    w = jax.nn.softmax(scores / math.sqrt(HEAD_DIM), axis=-1)
    ctx = (w @ v).transpose(0, 2, 1, 3).reshape(b, T, D_OUT)
    return ctx @ Wo.T


# --------------------------------- main --------------------------------------
if __name__ == "__main__":
    key = jax.random.PRNGKey(0)
    kx, kq, kk, kv, ko = jax.random.split(key, 5)

    x = jax.random.normal(kx, (BATCH, SEQ, D_IN), dtype=jnp.float32)

    # torch nn.Linear weights are (out_features, in_features)
    Wq = jax.random.normal(kq, (D_OUT, D_IN), dtype=jnp.float32) * 0.05
    Wk = jax.random.normal(kk, (KV_DIM, D_IN), dtype=jnp.float32) * 0.05
    Wv = jax.random.normal(kv, (KV_DIM, D_IN), dtype=jnp.float32) * 0.05
    Wo = jax.random.normal(ko, (D_OUT, D_OUT), dtype=jnp.float32) * 0.05

    cos_full, sin_full = precompute_rope_params(HEAD_DIM, ROPE_BASE, CONTEXT_LENGTH)

    out = gqa_forward(x, Wq, Wk, Wv, Wo, cos_full, sin_full)
    out = jax.block_until_ready(out)

    ref = gqa_reference(x, Wq, Wk, Wv, Wo, cos_full, sin_full)
    assert out.shape == (BATCH, SEQ, D_OUT), out.shape
    # bf16 MXU operands + approx reciprocal -> bf16-level tolerance vs f32 reference
    assert jnp.allclose(out, ref, atol=2e-2, rtol=2e-2), float(jnp.max(jnp.abs(out - ref)))

    print("KERNEL_OK")
</pallas_src>

<mosaic_0001>
module attributes {stable_mosaic.version = 11 : i64} {
  func.func @gqa_kernel(%arg0: i32, %arg1: memref<16x32xbf16, #tpu.memory_space<vmem>>, %arg2: memref<32x64xbf16, #tpu.memory_space<vmem>>, %arg3: memref<32x32xbf16, #tpu.memory_space<vmem>>, %arg4: memref<16x32xf32, #tpu.memory_space<vmem>>, %arg5: memref<16x32xf32, #tpu.memory_space<vmem>>, %arg6: memref<16x32xf32, #tpu.memory_space<vmem>>) attributes {dimension_semantics = [#tpu.dimension_semantics<arbitrary>], iteration_bounds = array<i64: 1>, scalar_prefetch = 0 : i64, scratch_operands = 0 : i64, tpu.core_type = #tpu.core_type<tc>, window_params = [{pipeline_mode = #tpu.pipeline_mode<synchronous>, transform_indices = @transform_0, window_bounds = array<i64: 16, 32>}, {pipeline_mode = #tpu.pipeline_mode<synchronous>, transform_indices = @transform_1, window_bounds = array<i64: 32, 64>}, {pipeline_mode = #tpu.pipeline_mode<synchronous>, transform_indices = @transform_2, window_bounds = array<i64: 32, 32>}, {pipeline_mode = #tpu.pipeline_mode<synchronous>, transform_indices = @transform_3, window_bounds = array<i64: 16, 32>}, {pipeline_mode = #tpu.pipeline_mode<synchronous>, transform_indices = @transform_4, window_bounds = array<i64: 16, 32>}, {pipeline_mode = #tpu.pipeline_mode<synchronous>, transform_indices = @transform_5, window_bounds = array<i64: 16, 32>}]} {
    %c0 = arith.constant 0 : index
    %c0_0 = arith.constant 0 : index
    %0 = vector.load %arg1[%c0, %c0_0] : memref<16x32xbf16, #tpu.memory_space<vmem>>, vector<16x32xbf16>
    %c0_1 = arith.constant 0 : index
    %c0_2 = arith.constant 0 : index
    %1 = vector.load %arg2[%c0_1, %c0_2] : memref<32x64xbf16, #tpu.memory_space<vmem>>, vector<32x64xbf16>
    %cst = arith.constant dense<0.000000e+00> : vector<16x64xf32>
    %2 = tpu.matmul %0, %1, %cst {dimension_numbers = #tpu.dot_dimension_numbers<[1], [0], [0], [1], [0, 0, 1, 1], [], []>} : vector<16x32xbf16>, vector<32x64xbf16>, vector<16x64xf32> -> vector<16x64xf32>
    %3 = vector.extract_strided_slice %2 {offsets = [0, 0], sizes = [16, 32], strides = [1, 1]} : vector<16x64xf32> to vector<16x32xf32>
    %4 = vector.extract_strided_slice %2 {offsets = [0, 32], sizes = [16, 16], strides = [1, 1]} : vector<16x64xf32> to vector<16x16xf32>
    %5 = vector.extract_strided_slice %2 {offsets = [0, 48], sizes = [16, 16], strides = [1, 1]} : vector<16x64xf32> to vector<16x16xf32>
    %c0_3 = arith.constant 0 : index
    %c0_4 = arith.constant 0 : index
    %6 = vector.load %arg4[%c0_3, %c0_4] : memref<16x32xf32, #tpu.memory_space<vmem>>, vector<16x32xf32>
    %c0_5 = arith.constant 0 : index
    %c0_6 = arith.constant 0 : index
    %7 = vector.load %arg5[%c0_5, %c0_6] : memref<16x32xf32, #tpu.memory_space<vmem>>, vector<16x32xf32>
    %8 = vector.extract_strided_slice %3 {offsets = [0, 4], sizes = [16, 4], strides = [1, 1]} : vector<16x32xf32> to vector<16x4xf32>
    %9 = vector.extract_strided_slice %3 {offsets = [0, 0], sizes = [16, 4], strides = [1, 1]} : vector<16x32xf32> to vector<16x4xf32>
    %10 = vector.extract_strided_slice %3 {offsets = [0, 12], sizes = [16, 4], strides = [1, 1]} : vector<16x32xf32> to vector<16x4xf32>
    %11 = vector.extract_strided_slice %3 {offsets = [0, 8], sizes = [16, 4], strides = [1, 1]} : vector<16x32xf32> to vector<16x4xf32>
    %12 = vector.extract_strided_slice %3 {offsets = [0, 20], sizes = [16, 4], strides = [1, 1]} : vector<16x32xf32> to vector<16x4xf32>
    %13 = vector.extract_strided_slice %3 {offsets = [0, 16], sizes = [16, 4], strides = [1, 1]} : vector<16x32xf32> to vector<16x4xf32>
    %14 = vector.extract_strided_slice %3 {offsets = [0, 28], sizes = [16, 4], strides = [1, 1]} : vector<16x32xf32> to vector<16x4xf32>
    %15 = vector.extract_strided_slice %3 {offsets = [0, 24], sizes = [16, 4], strides = [1, 1]} : vector<16x32xf32> to vector<16x4xf32>
    %16 = tpu.concatenate %8, %9, %10, %11, %12, %13, %14, %15 in 1 : vector<16x4xf32>, vector<16x4xf32>, vector<16x4xf32>, vector<16x4xf32>, vector<16x4xf32>, vector<16x4xf32>, vector<16x4xf32>, vector<16x4xf32> -> vector<16x32xf32>
    %17 = arith.mulf %3, %6 : vector<16x32xf32>
    %18 = arith.mulf %16, %7 : vector<16x32xf32>
    %19 = arith.addf %17, %18 : vector<16x32xf32>
    %20 = vector.extract_strided_slice %6 {offsets = [0, 0], sizes = [16, 16], strides = [1, 1]} : vector<16x32xf32> to vector<16x16xf32>
    %21 = vector.extract_strided_slice %7 {offsets = [0, 0], sizes = [16, 16], strides = [1, 1]} : vector<16x32xf32> to vector<16x16xf32>
    %22 = vector.extract_strided_slice %4 {offsets = [0, 4], sizes = [16, 4], strides = [1, 1]} : vector<16x16xf32> to vector<16x4xf32>
    %23 = vector.extract_strided_slice %4 {offsets = [0, 0], sizes = [16, 4], strides = [1, 1]} : vector<16x16xf32> to vector<16x4xf32>
    %24 = vector.extract_strided_slice %4 {offsets = [0, 12], sizes = [16, 4], strides = [1, 1]} : vector<16x16xf32> to vector<16x4xf32>
    %25 = vector.extract_strided_slice %4 {offsets = [0, 8], sizes = [16, 4], strides = [1, 1]} : vector<16x16xf32> to vector<16x4xf32>
    %26 = tpu.concatenate %22, %23, %24, %25 in 1 : vector<16x4xf32>, vector<16x4xf32>, vector<16x4xf32>, vector<16x4xf32> -> vector<16x16xf32>
    %27 = arith.mulf %4, %20 : vector<16x16xf32>
    %28 = arith.mulf %26, %21 : vector<16x16xf32>
    %29 = arith.addf %27, %28 : vector<16x16xf32>
    %30 = vector.shape_cast %19 : vector<16x32xf32> to vector<2x8x32xf32>
    %31 = arith.truncf %30 : vector<2x8x32xf32> to vector<2x8x32xbf16>
    %32 = vector.shape_cast %29 : vector<16x16xf32> to vector<2x8x16xf32>
    %33 = arith.truncf %32 : vector<2x8x16xf32> to vector<2x8x16xbf16>
    %34 = vector.shape_cast %5 : vector<16x16xf32> to vector<2x8x16xf32>
    %35 = arith.truncf %34 : vector<2x8x16xf32> to vector<2x8x16xbf16>
    %36 = vector.extract_strided_slice %31 {offsets = [0, 0, 0], sizes = [2, 8, 8], strides = [1, 1, 1]} : vector<2x8x32xbf16> to vector<2x8x8xbf16>
    %37 = vector.extract_strided_slice %31 {offsets = [0, 0, 8], sizes = [2, 8, 8], strides = [1, 1, 1]} : vector<2x8x32xbf16> to vector<2x8x8xbf16>
    %38 = vector.extract_strided_slice %31 {offsets = [0, 0, 16], sizes = [2, 8, 8], strides = [1, 1, 1]} : vector<2x8x32xbf16> to vector<2x8x8xbf16>
    %39 = vector.extract_strided_slice %31 {offsets = [0, 0, 24], sizes = [2, 8, 8], strides = [1, 1, 1]} : vector<2x8x32xbf16> to vector<2x8x8xbf16>
    %40 = tpu.concatenate %36, %37, %38, %39 in 0 : vector<2x8x8xbf16>, vector<2x8x8xbf16>, vector<2x8x8xbf16>, vector<2x8x8xbf16> -> vector<8x8x8xbf16>
    %41 = vector.extract_strided_slice %33 {offsets = [0, 0, 0], sizes = [2, 8, 8], strides = [1, 1, 1]} : vector<2x8x16xbf16> to vector<2x8x8xbf16>
    %42 = vector.extract_strided_slice %33 {offsets = [0, 0, 0], sizes = [2, 8, 8], strides = [1, 1, 1]} : vector<2x8x16xbf16> to vector<2x8x8xbf16>
    %43 = vector.extract_strided_slice %33 {offsets = [0, 0, 8], sizes = [2, 8, 8], strides = [1, 1, 1]} : vector<2x8x16xbf16> to vector<2x8x8xbf16>
    %44 = vector.extract_strided_slice %33 {offsets = [0, 0, 8], sizes = [2, 8, 8], strides = [1, 1, 1]} : vector<2x8x16xbf16> to vector<2x8x8xbf16>
    %45 = tpu.concatenate %41, %42, %43, %44 in 0 : vector<2x8x8xbf16>, vector<2x8x8xbf16>, vector<2x8x8xbf16>, vector<2x8x8xbf16> -> vector<8x8x8xbf16>
    %46 = vector.extract_strided_slice %35 {offsets = [0, 0, 0], sizes = [2, 8, 8], strides = [1, 1, 1]} : vector<2x8x16xbf16> to vector<2x8x8xbf16>
    %47 = vector.extract_strided_slice %35 {offsets = [0, 0, 0], sizes = [2, 8, 8], strides = [1, 1, 1]} : vector<2x8x16xbf16> to vector<2x8x8xbf16>
    %48 = vector.extract_strided_slice %35 {offsets = [0, 0, 8], sizes = [2, 8, 8], strides = [1, 1, 1]} : vector<2x8x16xbf16> to vector<2x8x8xbf16>
    %49 = vector.extract_strided_slice %35 {offsets = [0, 0, 8], sizes = [2, 8, 8], strides = [1, 1, 1]} : vector<2x8x16xbf16> to vector<2x8x8xbf16>
    %50 = tpu.concatenate %46, %47, %48, %49 in 0 : vector<2x8x8xbf16>, vector<2x8x8xbf16>, vector<2x8x8xbf16>, vector<2x8x8xbf16> -> vector<8x8x8xbf16>
    "tpu.trace_start"() <{level = 10 : i32, message = "bqd,bkd->bqk"}> : () -> ()
    %cst_7 = arith.constant dense<0.000000e+00> : vector<8x8x8xf32>
    %51 = tpu.matmul %40, %45, %cst_7 {dimension_numbers = #tpu.dot_dimension_numbers<[2], [2], [1], [1], [0, 0, 0, 1, 1, 1], [0], [0]>} : vector<8x8x8xbf16>, vector<8x8x8xbf16>, vector<8x8x8xf32> -> vector<8x8x8xf32>
    "tpu.trace_stop"() : () -> ()
    %52 = tpu.iota {dimensions = array<i32: 1>} : vector<8x8x8xi32>
    %53 = tpu.iota {dimensions = array<i32: 2>} : vector<8x8x8xi32>
    %54 = arith.cmpi sgt, %53, %52 : vector<8x8x8xi32>
    %cst_8 = arith.constant 0xFF800000 : f32
    %55 = vector.broadcast %cst_8 : f32 to vector<8x8x8xf32>
    %56 = arith.select %54, %55, %51 : vector<8x8x8xi1>, vector<8x8x8xf32>
    %cst_9 = arith.constant dense<0xFF800000> : vector<8x8xf32>
    %57 = vector.multi_reduction <maximumf>, %56, %cst_9 [2] : vector<8x8x8xf32> to vector<8x8xf32>
    %58 = vector.shape_cast %57 : vector<8x8xf32> to vector<8x8x1xf32>
    %59 = vector.broadcast %58 : vector<8x8x1xf32> to vector<8x8x8xf32>
    %60 = arith.subf %56, %59 : vector<8x8x8xf32>
    %61 = math.exp %60 : vector<8x8x8xf32>
    %cst_10 = arith.constant dense<0.000000e+00> : vector<8x8xf32>
    %62 = vector.multi_reduction <add>, %61, %cst_10 [2] : vector<8x8x8xf32> to vector<8x8xf32>
    %63 = vector.shape_cast %62 : vector<8x8xf32> to vector<8x8x1xf32>
    %64 = tpu.reciprocal %63 {approx = true} : vector<8x8x1xf32> -> vector<8x8x1xf32>
    %65 = vector.broadcast %64 : vector<8x8x1xf32> to vector<8x8x8xf32>
    %66 = arith.mulf %61, %65 : vector<8x8x8xf32>
    %67 = arith.truncf %66 : vector<8x8x8xf32> to vector<8x8x8xbf16>
    "tpu.trace_start"() <{level = 10 : i32, message = "bqk,bkd->bqd"}> : () -> ()
    %cst_11 = arith.constant dense<0.000000e+00> : vector<8x8x8xf32>
    %68 = tpu.matmul %67, %50, %cst_11 {dimension_numbers = #tpu.dot_dimension_numbers<[2], [1], [1], [2], [0, 0, 0, 1, 1, 2], [0], [0]>} : vector<8x8x8xbf16>, vector<8x8x8xbf16>, vector<8x8x8xf32> -> vector<8x8x8xf32>
    "tpu.trace_stop"() : () -> ()
    %69 = vector.extract_strided_slice %68 {offsets = [0, 0, 0], sizes = [2, 8, 8], strides = [1, 1, 1]} : vector<8x8x8xf32> to vector<2x8x8xf32>
    %70 = vector.extract_strided_slice %68 {offsets = [2, 0, 0], sizes = [2, 8, 8], strides = [1, 1, 1]} : vector<8x8x8xf32> to vector<2x8x8xf32>
    %71 = vector.extract_strided_slice %68 {offsets = [4, 0, 0], sizes = [2, 8, 8], strides = [1, 1, 1]} : vector<8x8x8xf32> to vector<2x8x8xf32>
    %72 = vector.extract_strided_slice %68 {offsets = [6, 0, 0], sizes = [2, 8, 8], strides = [1, 1, 1]} : vector<8x8x8xf32> to vector<2x8x8xf32>
    %73 = tpu.concatenate %69, %70, %71, %72 in 2 : vector<2x8x8xf32>, vector<2x8x8xf32>, vector<2x8x8xf32>, vector<2x8x8xf32> -> vector<2x8x32xf32>
    %74 = vector.shape_cast %73 : vector<2x8x32xf32> to vector<16x32xf32>
    %75 = arith.truncf %74 : vector<16x32xf32> to vector<16x32xbf16>
    %c0_12 = arith.constant 0 : index
    %c0_13 = arith.constant 0 : index
    %76 = vector.load %arg3[%c0_12, %c0_13] : memref<32x32xbf16, #tpu.memory_space<vmem>>, vector<32x32xbf16>
    %cst_14 = arith.constant dense<0.000000e+00> : vector<16x32xf32>
    %77 = tpu.matmul %75, %76, %cst_14 {dimension_numbers = #tpu.dot_dimension_numbers<[1], [0], [0], [1], [0, 0, 1, 1], [], []>} : vector<16x32xbf16>, vector<32x32xbf16>, vector<16x32xf32> -> vector<16x32xf32>
    %c0_15 = arith.constant 0 : index
    %c0_16 = arith.constant 0 : index
    %78 = vector.load %arg6[%c0_15, %c0_16] : memref<16x32xf32, #tpu.memory_space<vmem>>, vector<16x32xf32>
    tpu.vector_store %arg6[%c0_15, %c0_16], %77 {strides = array<i32>} : memref<16x32xf32, #tpu.memory_space<vmem>>, vector<16x32xf32>,
    return
  }
  func.func @transform_0(%arg0: i32) -> (i32, i32) {
    %c0_i32 = arith.constant 0 : i32
    %c0_i32_0 = arith.constant 0 : i32
    %c0_i32_1 = arith.constant 0 : i32
    return %c0_i32, %c0_i32_0 : i32, i32
  }
  func.func @transform_1(%arg0: i32) -> (i32, i32) {
    %c0_i32 = arith.constant 0 : i32
    %c0_i32_0 = arith.constant 0 : i32
    %c0_i32_1 = arith.constant 0 : i32
    return %c0_i32, %c0_i32_0 : i32, i32
  }
  func.func @transform_2(%arg0: i32) -> (i32, i32) {
    %c0_i32 = arith.constant 0 : i32
    %c0_i32_0 = arith.constant 0 : i32
    %c0_i32_1 = arith.constant 0 : i32
    return %c0_i32, %c0_i32_0 : i32, i32
  }
  func.func @transform_3(%arg0: i32) -> (i32, i32) {
    %c0_i32 = arith.constant 0 : i32
    %c0_i32_0 = arith.constant 0 : i32
    %c0_i32_1 = arith.constant 0 : i32
    return %c0_i32, %c0_i32_0 : i32, i32
  }
  func.func @transform_4(%arg0: i32) -> (i32, i32) {
    %c0_i32 = arith.constant 0 : i32
    %c0_i32_0 = arith.constant 0 : i32
    %c0_i32_1 = arith.constant 0 : i32
    return %c0_i32, %c0_i32_0 : i32, i32
  }
  func.func @transform_5(%arg0: i32) -> (i32, i32) {
    %c0_i32 = arith.constant 0 : i32
    %c0_i32_0 = arith.constant 0 : i32
    %c0_i32_1 = arith.constant 0 : i32
    return %c0_i32, %c0_i32_0 : i32, i32
  }
}

</mosaic_0001>

<llo_original>
// kernel: gqa_forward.1
$region0: #{gqa_forward.1}
  #allocation0 [shape = 'u32[]', space=smem, size = 0x4, offset = 0x4, fixed_abs, tag = 'smem constant byte address 0x4 - core index']
  #allocation1 [shape = 'u32[72,128]{1,0:T(1,128)}', space=vmem, size = 0x9000, scoped, tag = 'internal scratch']
  %s0 = inlined_call_operand.vmem [shape: bf16[16,32], index: 0, kind: input, shape index: {}]
  %s1 = inlined_call_operand.vmem [shape: bf16[32,64], index: 1, kind: input, shape index: {}]
  %s2 = inlined_call_operand.vmem [shape: bf16[32,32], index: 2, kind: input, shape index: {}]
  %s3 = inlined_call_operand.vmem [shape: f32[16,32], index: 3, kind: input, shape index: {}]
  %s4 = inlined_call_operand.vmem [shape: f32[16,32], index: 4, kind: input, shape index: {}]
  %s5 = inlined_call_operand.hbm [shape: f32[16,32], index: 5, kind: output, shape index: {}]
  %s6 = sld [smem:[#allocation0]]
  $region30: #{gqa_forward.1} parent=0
    _
  %s8 = ssub.s32 1, %s6
  %s9 = scalar_select 0, %s8, %s6
  $region1: #{gqa_forward.1} parent=0
    #allocation2 [shape = 'u8[8192]{0}', space=vmem, size = 0x2000, scoped, tag = 'output window, operand 0, single buffered']
    #allocation3 [shape = 's32[1]{0}', space=sflag, size = 0x4, scoped, tag = 'scoped memory for gqa_forward.1']
    %10 = vsyncpa [#allocation3], 0
    // Predicated region
    $region2: #{gqa_forward.1} parent=1 // pred_check
      _
    $region3: #{gqa_forward.1} parent=1 // pred_check_branch
      %12 = sbr.rel (0) target = $region5
    $region4: #{gqa_forward.1} parent=1 // pred_region
      _
    $region5: #{gqa_forward.1} parent=1 // pred_fallthru
      _
    // Predicated region
    $region6: #{gqa_forward.1} parent=1 // pred_check
      _
    $region7: #{gqa_forward.1} parent=1 // pred_check_branch
      %14 = sbr.rel (0) target = $region9
    $region8: #{gqa_forward.1} parent=1 // pred_region
      _
    $region9: #{gqa_forward.1} parent=1 // pred_fallthru
      _
    // Predicated region
    $region10: #{gqa_forward.1} parent=1 // pred_check
      _
    $region11: #{gqa_forward.1} parent=1 // pred_check_branch
      %16 = sbr.rel (0) target = $region13
    $region12: #{gqa_forward.1} parent=1 // pred_region
      _
    $region13: #{gqa_forward.1} parent=1 // pred_fallthru
      _
    // Predicated region
    $region14: #{gqa_forward.1} parent=1 // pred_check
      _
    $region15: #{gqa_forward.1} parent=1 // pred_check_branch
      %18 = sbr.rel (0) target = $region17
    $region16: #{gqa_forward.1} parent=1 // pred_region
      _
    $region17: #{gqa_forward.1} parent=1 // pred_fallthru
      _
    // Predicated region
    $region18: #{gqa_forward.1} parent=1 // pred_check
      _
    $region19: #{gqa_forward.1} parent=1 // pred_check_branch
      %20 = sbr.rel (0) target = $region21
    $region20: #{gqa_forward.1} parent=1 // pred_region
      _
    $region21: #{gqa_forward.1} parent=1 // pred_fallthru
      _
    %v22 = vld [vmem:[%s0] sm:$0xf]
    %v23 = vld [vmem:[%s0 + $0x4] sm:$0xf]
    %v24 = vld [vmem:[%s1] sm:$0xf]
    %v25 = vld [vmem:[%s1 + $0x4] sm:$0xf]
    %v26 = vld [vmem:[%s1 + $0x8] sm:$0xf]
    %v27 = vld [vmem:[%s1 + $0xc] sm:$0xf]
    %v30 = vunpack.c.l.b16 %v22
    %v31 = vunpack.c.l.b16 %v23
    %v32 = vpack.c.b16 %v31, %v30
    %v37 = vunpack.c.l.b16 %v24
    %v38 = vunpack.c.l.b16 %v25
    %v39 = vunpack.c.l.b16 %v26
    %v40 = vunpack.c.l.b16 %v27
    %v41 = vpack.c.b16 %v38, %v37
    %v42 = vpack.c.b16 %v40, %v39
    %vm45 = vcmask 261120
    %v47 = vsel %vm45, %v32, 0
    %49 = vmatpush.bf16.msra.mxu0 0
    %50 = vmatpush.bf16.msra.mxu0 0
    %51 = vmatpush.bf16.msra.mxu0 0
    %52 = vmatpush.bf16.msra.mxu0 0
    %53 = vmatpush.bf16.msra.mxu0 0
    %54 = vmatpush.bf16.msra.mxu0 0
    %55 = vmatpush.bf16.msra.mxu0 %v42
    %56 = vmatpush.bf16.msra.mxu0 %v41
    %57 = vmatmul.bf16.gmra.mxu0 %v47
    %v58 = vpop.f32.mrf.mxu0
    %v59 = vadd.f32 0.0, %v58
    %v60 = vpop.f32.mrf.mxu0
    %v61 = vadd.f32 0.0, %v60
    %62 = vdwg.mxu0
    %v63 = vld [vmem:[%s3] sm:$0xff]
    %v64 = vld [vmem:[%s3 + $0x8] sm:$0xff]
    %v65 = vld [vmem:[%s4] sm:$0xff]
    %v66 = vld [vmem:[%s4 + $0x8] sm:$0xff]
    %69 = vrot.lane.b32.xlu0 %v59, 124
    %v70 = vpop.permute.xlu0 %69
    %71 = vrot.lane.b32.xlu0 %v61, 124
    %v72 = vpop.permute.xlu0 %71
    %75 = vrot.lane.b32.xlu0 %v59, 4
    %v76 = vpop.permute.xlu0 %75
    %77 = vrot.lane.b32.xlu0 %v61, 4
    %v78 = vpop.permute.xlu0 %77
    %vm81 = vcmask 31744
    %v82 = vsel %vm81, %v70, %v76
    %v83 = vsel %vm81, %v72, %v78
    %vm84 = vcmask 64512
    %v85 = vsel %vm84, %v82, %v70
    %v86 = vsel %vm84, %v83, %v72
    %vm87 = vcmask 97280
    %v88 = vsel %vm87, %v85, %v76
    %v89 = vsel %vm87, %v86, %v78
    %vm90 = vcmask 130048
    %v91 = vsel %vm90, %v88, %v70
    %v92 = vsel %vm90, %v89, %v72
    %vm93 = vcmask 162816
    %v94 = vsel %vm93, %v91, %v76
    %v95 = vsel %vm93, %v92, %v78
    %vm96 = vcmask 195584
    %v97 = vsel %vm96, %v94, %v70
    %v98 = vsel %vm96, %v95, %v72
    %vm99 = vcmask 228352
    %v100 = vsel %vm99, %v97, %v76
    %v101 = vsel %vm99, %v98, %v78
    %v102 = vmul.f32 %v59, %v63
    %v103 = vmul.f32 %v61, %v64
    %v104 = vmul.f32 %v100, %v65
    %v105 = vmul.f32 %v101, %v66
    %v106 = vadd.f32 %v102, %v104
    %v107 = vadd.f32 %v103, %v105
    %108 = vrot.lane.b32.xlu0 %v59, 92
    %v109 = vpop.permute.xlu0 %108
    %110 = vrot.lane.b32.xlu0 %v61, 92
    %v111 = vpop.permute.xlu0 %110
    %114 = vrot.lane.b32.xlu0 %v59, 100
    %v115 = vpop.permute.xlu0 %114
    %116 = vrot.lane.b32.xlu0 %v61, 100
    %v117 = vpop.permute.xlu0 %116
    %v120 = vsel %vm81, %v109, %v115
    %v121 = vsel %vm81, %v111, %v117
    %v122 = vsel %vm84, %v120, %v109
    %v123 = vsel %vm84, %v121, %v111
    %v124 = vsel %vm87, %v122, %v115
    %v125 = vsel %vm87, %v123, %v117
    %128 = vrot.lane.b32.xlu0 %v63, 32
    %v129 = vpop.permute.xlu0 %128
    %130 = vrot.lane.b32.xlu0 %v64, 32
    %v131 = vpop.permute.xlu0 %130
    %v134 = vmul.f32 %v59, %v129
    %v135 = vmul.f32 %v61, %v131
    %v136 = vmul.f32 %v124, %v65
    %v137 = vmul.f32 %v125, %v66
    %140 = vrot.lane.b32.xlu0 %v136, 32
    %v141 = vpop.permute.xlu0 %140
    %142 = vrot.lane.b32.xlu0 %v137, 32
    %v143 = vpop.permute.xlu0 %142
    %v146 = vadd.f32 %v134, %v141
    %v147 = vadd.f32 %v135, %v143
    %v148 = vpack.c.bf16 %v106, %v106
    %v149 = vpack.c.bf16 %v107, %v107
    %v150 = vpack.c.bf16 %v146, %v146
    %v151 = vpack.c.bf16 %v147, %v147
    %v152 = vpack.c.bf16 %v59, %v59
    %v153 = vpack.c.bf16 %v61, %v61
    %156 = vrot.lane.b32.xlu0 %v148, 120
    %v157 = vpop.permute.xlu0 %156
    %158 = vrot.lane.b32.xlu0 %v149, 120
    %v159 = vpop.permute.xlu0 %158
    %160 = vrot.lane.b32.xlu0 %v148, 112
    %v161 = vpop.permute.xlu0 %160
    %162 = vrot.lane.b32.xlu0 %v149, 112
    %v163 = vpop.permute.xlu0 %162
    %164 = vrot.lane.b32.xlu0 %v148, 104
    %v165 = vpop.permute.xlu0 %164
    %166 = vrot.lane.b32.xlu0 %v149, 104
    %v167 = vpop.permute.xlu0 %166
    %170 = vrot.lane.b32.xlu0 %v150, 120
    %v171 = vpop.permute.xlu0 %170
    %172 = vrot.lane.b32.xlu0 %v151, 120
    %v173 = vpop.permute.xlu0 %172
    %176 = vrot.lane.b32.xlu0 %v152, 120
    %v177 = vpop.permute.xlu0 %176
    %178 = vrot.lane.b32.xlu0 %v153, 120
    %v179 = vpop.permute.xlu0 %178
    %v180 = vunpack.c.l.b16 %v150
    %v181 = vpack.c.b16 %v180, %v180
    %182 = vrot.lane.b32.xlu0 %v181, 96
    %v183 = vpop.permute.xlu0 %182
    %v185 = vsel %vm84, %v148, 0
    %v188 = vsel %vm84, %v183, 0
    %190 = vmatpush.bf16.xpose.msra.mxu0 0
    %191 = vmatpush.bf16.xpose.msra.mxu0 0
    %192 = vmatpush.bf16.xpose.msra.mxu0 0
    %193 = vmatpush.bf16.xpose.msra.mxu0 0
    %194 = vmatpush.bf16.xpose.msra.mxu0 0
    %195 = vmatpush.bf16.xpose.msra.mxu0 0
    %196 = vmatpush.bf16.xpose.msra.mxu0 0
    %197 = vmatpush.bf16.xpose.msra.mxu0 %v188
    %198 = vmatmul.bf16.gmra.mxu0 %v185
    %v199 = vpop.f32.mrf.mxu0
    %v200 = vadd.f32 0.0, %v199
    %v201 = vpop.f32.mrf.mxu0
    %202 = vdwg.mxu0
    %v203 = vunpack.c.l.b16 %v151
    %v204 = vpack.c.b16 %v203, %v203
    %205 = vrot.lane.b32.xlu0 %v204, 96
    %v206 = vpop.permute.xlu0 %205
    %v208 = vsel %vm84, %v149, 0
    %v211 = vsel %vm84, %v206, 0
    %213 = vmatpush.bf16.xpose.msra.mxu0 0
    %214 = vmatpush.bf16.xpose.msra.mxu0 0
    %215 = vmatpush.bf16.xpose.msra.mxu0 0
    %216 = vmatpush.bf16.xpose.msra.mxu0 0
    %217 = vmatpush.bf16.xpose.msra.mxu0 0
    %218 = vmatpush.bf16.xpose.msra.mxu0 0
    %219 = vmatpush.bf16.xpose.msra.mxu0 0
    %220 = vmatpush.bf16.xpose.msra.mxu0 %v211
    %221 = vmatmul.bf16.gmra.mxu0 %v208
    %v222 = vpop.f32.mrf.mxu0
    %v223 = vadd.f32 0.0, %v222
    %v224 = vpop.f32.mrf.mxu0
    %225 = vdwg.mxu0
    %v227 = vsel %vm84, %v157, 0
    %229 = vmatpush.bf16.xpose.msra.mxu0 0
    %230 = vmatpush.bf16.xpose.msra.mxu0 0
    %231 = vmatpush.bf16.xpose.msra.mxu0 0
    %232 = vmatpush.bf16.xpose.msra.mxu0 0
    %233 = vmatpush.bf16.xpose.msra.mxu0 0
    %234 = vmatpush.bf16.xpose.msra.mxu0 0
    %235 = vmatpush.bf16.xpose.msra.mxu0 0
    %236 = vmatpush.bf16.xpose.msra.mxu0 %v188
    %237 = vmatmul.bf16.gmra.mxu0 %v227
    %v238 = vpop.f32.mrf.mxu0
    %v239 = vadd.f32 0.0, %v238
    %v240 = vpop.f32.mrf.mxu0
    %241 = vdwg.mxu0
    %v243 = vsel %vm84, %v159, 0
    %245 = vmatpush.bf16.xpose.msra.mxu0 0
    %246 = vmatpush.bf16.xpose.msra.mxu0 0
    %247 = vmatpush.bf16.xpose.msra.mxu0 0
    %248 = vmatpush.bf16.xpose.msra.mxu0 0
    %249 = vmatpush.bf16.xpose.msra.mxu0 0
    %250 = vmatpush.bf16.xpose.msra.mxu0 0
    %251 = vmatpush.bf16.xpose.msra.mxu0 0
    %252 = vmatpush.bf16.xpose.msra.mxu0 %v211
    %253 = vmatmul.bf16.gmra.mxu0 %v243
    %v254 = vpop.f32.mrf.mxu0
    %v255 = vadd.f32 0.0, %v254
    %v256 = vpop.f32.mrf.mxu0
    %257 = vdwg.mxu0
    %v258 = vunpack.c.l.b16 %v171
    %v259 = vpack.c.b16 %v258, %v258
    %260 = vrot.lane.b32.xlu0 %v259, 96
    %v261 = vpop.permute.xlu0 %260
    %v263 = vsel %vm84, %v161, 0
    %v266 = vsel %vm84, %v261, 0
    %268 = vmatpush.bf16.xpose.msra.mxu0 0
    %269 = vmatpush.bf16.xpose.msra.mxu0 0
    %270 = vmatpush.bf16.xpose.msra.mxu0 0
    %271 = vmatpush.bf16.xpose.msra.mxu0 0
    %272 = vmatpush.bf16.xpose.msra.mxu0 0
    %273 = vmatpush.bf16.xpose.msra.mxu0 0
    %274 = vmatpush.bf16.xpose.msra.mxu0 0
    %275 = vmatpush.bf16.xpose.msra.mxu0 %v266
    %276 = vmatmul.bf16.gmra.mxu0 %v263
    %v277 = vpop.f32.mrf.mxu0
    %v278 = vadd.f32 0.0, %v277
    %v279 = vpop.f32.mrf.mxu0
    %280 = vdwg.mxu0
    %v281 = vunpack.c.l.b16 %v173
    %v282 = vpack.c.b16 %v281, %v281
    %283 = vrot.lane.b32.xlu0 %v282, 96
    %v284 = vpop.permute.xlu0 %283
    %v286 = vsel %vm84, %v163, 0
    %v289 = vsel %vm84, %v284, 0
    %291 = vmatpush.bf16.xpose.msra.mxu0 0
    %292 = vmatpush.bf16.xpose.msra.mxu0 0
    %293 = vmatpush.bf16.xpose.msra.mxu0 0
    %294 = vmatpush.bf16.xpose.msra.mxu0 0
    %295 = vmatpush.bf16.xpose.msra.mxu0 0
    %296 = vmatpush.bf16.xpose.msra.mxu0 0
    %297 = vmatpush.bf16.xpose.msra.mxu0 0
    %298 = vmatpush.bf16.xpose.msra.mxu0 %v289
    %299 = vmatmul.bf16.gmra.mxu0 %v286
    %v300 = vpop.f32.mrf.mxu0
    %v301 = vadd.f32 0.0, %v300
    %v302 = vpop.f32.mrf.mxu0
    %303 = vdwg.mxu0
    %v305 = vsel %vm84, %v165, 0
    %307 = vmatpush.bf16.xpose.msra.mxu0 0
    %308 = vmatpush.bf16.xpose.msra.mxu0 0
    %309 = vmatpush.bf16.xpose.msra.mxu0 0
    %310 = vmatpush.bf16.xpose.msra.mxu0 0
    %311 = vmatpush.bf16.xpose.msra.mxu0 0
    %312 = vmatpush.bf16.xpose.msra.mxu0 0
    %313 = vmatpush.bf16.xpose.msra.mxu0 0
    %314 = vmatpush.bf16.xpose.msra.mxu0 %v266
    %315 = vmatmul.bf16.gmra.mxu0 %v305
    %v316 = vpop.f32.mrf.mxu0
    %v317 = vadd.f32 0.0, %v316
    %v318 = vpop.f32.mrf.mxu0
    %319 = vdwg.mxu0
    %v321 = vsel %vm84, %v167, 0
    %323 = vmatpush.bf16.xpose.msra.mxu0 0
    %324 = vmatpush.bf16.xpose.msra.mxu0 0
    %325 = vmatpush.bf16.xpose.msra.mxu0 0
    %326 = vmatpush.bf16.xpose.msra.mxu0 0
    %327 = vmatpush.bf16.xpose.msra.mxu0 0
    %328 = vmatpush.bf16.xpose.msra.mxu0 0
    %329 = vmatpush.bf16.xpose.msra.mxu0 0
    %330 = vmatpush.bf16.xpose.msra.mxu0 %v289
    %331 = vmatmul.bf16.gmra.mxu0 %v321
    %v332 = vpop.f32.mrf.mxu0
    %v333 = vadd.f32 0.0, %v332
    %v334 = vpop.f32.mrf.mxu0
    %335 = vdwg.mxu0
    %v336 = vlaneseq
    %v337 = vshrl.u32 %v336, 7
    %v338 = vlaneseq
    %v339 = vand.u32 %v338, 127
    %vm340 = vcmp.gt.s32.totalorder %v339, %v337
    %v341 = vsel %vm340, -inf, %v200
    %v342 = vsel %vm340, -inf, %v223
    %v343 = vsel %vm340, -inf, %v239
    %v344 = vsel %vm340, -inf, %v255
    %v345 = vsel %vm340, -inf, %v278
    %v346 = vsel %vm340, -inf, %v301
    %v347 = vsel %vm340, -inf, %v317
    %v348 = vsel %vm340, -inf, %v333
    %v349 = vsel %vm84, %v341, -inf
    %350 = vmax.xlane.f32.xlu0 %v349
    %v351 = vpop.xlane.xlu0 %350
    %v352 = vsel %vm84, %v342, -inf
    %353 = vmax.xlane.f32.xlu0 %v352
    %v354 = vpop.xlane.xlu0 %353
    %v355 = vsel %vm84, %v343, -inf
    %356 = vmax.xlane.f32.xlu0 %v355
    %v357 = vpop.xlane.xlu0 %356
    %v358 = vsel %vm84, %v344, -inf
    %359 = vmax.xlane.f32.xlu0 %v358
    %v360 = vpop.xlane.xlu0 %359
    %v361 = vsel %vm84, %v345, -inf
    %362 = vmax.xlane.f32.xlu0 %v361
    %v363 = vpop.xlane.xlu0 %362
    %v364 = vsel %vm84, %v346, -inf
    %365 = vmax.xlane.f32.xlu0 %v364
    %v366 = vpop.xlane.xlu0 %365
    %v367 = vsel %vm84, %v347, -inf
    %368 = vmax.xlane.f32.xlu0 %v367
    %v369 = vpop.xlane.xlu0 %368
    %v370 = vsel %vm84, %v348, -inf
    %371 = vmax.xlane.f32.xlu0 %v370
    %v372 = vpop.xlane.xlu0 %371
    %v373 = vsub.f32 %v341, %v351
    %v374 = vsub.f32 %v342, %v354
    %v375 = vsub.f32 %v343, %v357
    %v376 = vsub.f32 %v344, %v360
    %v377 = vsub.f32 %v345, %v363
    %v378 = vsub.f32 %v346, %v366
    %v379 = vsub.f32 %v347, %v369
    %v380 = vsub.f32 %v348, %v372
    %v381 = vmul.f32 %v373, 1.442695
    %v382 = vpow.pop %v381
    %v383 = vmul.f32 %v374, 1.442695
    %v384 = vpow.pop %v383
    %v385 = vmul.f32 %v375, 1.442695
    %v386 = vpow.pop %v385
    %v387 = vmul.f32 %v376, 1.442695
    %v388 = vpow.pop %v387
    %v389 = vmul.f32 %v377, 1.442695
    %v390 = vpow.pop %v389
    %v391 = vmul.f32 %v378, 1.442695
    %v392 = vpow.pop %v391
    %v393 = vmul.f32 %v379, 1.442695
    %v394 = vpow.pop %v393
    %v395 = vmul.f32 %v380, 1.442695
    %v396 = vpow.pop %v395
    %v397 = vsel %vm84, %v382, 0.0
    %398 = vadd.xlane.f32.xlu0 %v397
    %v399 = vpop.xlane.xlu0 %398
    %v400 = vsel %vm84, %v384, 0.0
    %401 = vadd.xlane.f32.xlu0 %v400
    %v402 = vpop.xlane.xlu0 %401
    %v403 = vsel %vm84, %v386, 0.0
    %404 = vadd.xlane.f32.xlu0 %v403
    %v405 = vpop.xlane.xlu0 %404
    %v406 = vsel %vm84, %v388, 0.0
    %407 = vadd.xlane.f32.xlu0 %v406
    %v408 = vpop.xlane.xlu0 %407
    %v409 = vsel %vm84, %v390, 0.0
    %410 = vadd.xlane.f32.xlu0 %v409
    %v411 = vpop.xlane.xlu0 %410
    %v412 = vsel %vm84, %v392, 0.0
    %413 = vadd.xlane.f32.xlu0 %v412
    %v414 = vpop.xlane.xlu0 %413
    %v415 = vsel %vm84, %v394, 0.0
    %416 = vadd.xlane.f32.xlu0 %v415
    %v417 = vpop.xlane.xlu0 %416
    %v418 = vsel %vm84, %v396, 0.0
    %419 = vadd.xlane.f32.xlu0 %v418
    %v420 = vpop.xlane.xlu0 %419
    %v421 = vrcp.pop %v399
    %v422 = vrcp.pop %v402
    %v423 = vrcp.pop %v405
    %v424 = vrcp.pop %v408
    %v425 = vrcp.pop %v411
    %v426 = vrcp.pop %v414
    %v427 = vrcp.pop %v417
    %v428 = vrcp.pop %v420
    %v429 = vmul.f32 %v382, %v421
    %v430 = vmul.f32 %v384, %v422
    %v431 = vmul.f32 %v386, %v423
    %v432 = vmul.f32 %v388, %v424
    %v433 = vmul.f32 %v390, %v425
    %v434 = vmul.f32 %v392, %v426
    %v435 = vmul.f32 %v394, %v427
    %v436 = vmul.f32 %v396, %v428
    %v437 = vpack.c.bf16 %v429, %v429
    %v438 = vpack.c.bf16 %v430, %v430
    %v439 = vpack.c.bf16 %v431, %v431
    %v440 = vpack.c.bf16 %v432, %v432
    %v441 = vpack.c.bf16 %v433, %v433
    %v442 = vpack.c.bf16 %v434, %v434
    %v443 = vpack.c.bf16 %v435, %v435
    %v444 = vpack.c.bf16 %v436, %v436
    %v445 = vunpack.c.l.b16 %v152
    %v446 = vpack.c.b16 %v445, %v445
    %447 = vrot.lane.b32.xlu0 %v446, 80
    %v448 = vpop.permute.xlu0 %447
    %v450 = vsel %vm84, %v437, 0
    %vm452 = vcmask 1043456
    %v454 = vsel %vm452, %v448, 0
    %456 = vmatpush.bf16.msra.mxu0 0
    %457 = vmatpush.bf16.msra.mxu0 0
    %458 = vmatpush.bf16.msra.mxu0 0
    %459 = vmatpush.bf16.msra.mxu0 0
    %460 = vmatpush.bf16.msra.mxu0 0
    %461 = vmatpush.bf16.msra.mxu0 0
    %462 = vmatpush.bf16.msra.mxu0 0
    %463 = vmatpush.bf16.msra.mxu0 %v454
    %464 = vmatmul.bf16.gmra.mxu0 %v450
    %v465 = vpop.f32.mrf.mxu0
    %v466 = vadd.f32 0.0, %v465
    %v467 = vpop.f32.mrf.mxu0
    %468 = vdwg.mxu0
    %v469 = vunpack.c.l.b16 %v153
    %v470 = vpack.c.b16 %v469, %v469
    %471 = vrot.lane.b32.xlu0 %v470, 80
    %v472 = vpop.permute.xlu0 %471
    %v474 = vsel %vm84, %v438, 0
    %v477 = vsel %vm452, %v472, 0
    %479 = vmatpush.bf16.msra.mxu0 0
    %480 = vmatpush.bf16.msra.mxu0 0
    %481 = vmatpush.bf16.msra.mxu0 0
    %482 = vmatpush.bf16.msra.mxu0 0
    %483 = vmatpush.bf16.msra.mxu0 0
    %484 = vmatpush.bf16.msra.mxu0 0
    %485 = vmatpush.bf16.msra.mxu0 0
    %486 = vmatpush.bf16.msra.mxu0 %v477
    %487 = vmatmul.bf16.gmra.mxu0 %v474
    %v488 = vpop.f32.mrf.mxu0
    %v489 = vadd.f32 0.0, %v488
    %v490 = vpop.f32.mrf.mxu0
    %491 = vdwg.mxu0
    %v493 = vsel %vm84, %v439, 0
    %495 = vmatpush.bf16.msra.mxu0 0
    %496 = vmatpush.bf16.msra.mxu0 0
    %497 = vmatpush.bf16.msra.mxu0 0
    %498 = vmatpush.bf16.msra.mxu0 0
    %499 = vmatpush.bf16.msra.mxu0 0
    %500 = vmatpush.bf16.msra.mxu0 0
    %501 = vmatpush.bf16.msra.mxu0 0
    %502 = vmatpush.bf16.msra.mxu0 %v454
    %503 = vmatmul.bf16.gmra.mxu0 %v493
    %v504 = vpop.f32.mrf.mxu0
    %v505 = vadd.f32 0.0, %v504
    %v506 = vpop.f32.mrf.mxu0
    %507 = vdwg.mxu0
    %v509 = vsel %vm84, %v440, 0
    %511 = vmatpush.bf16.msra.mxu0 0
    %512 = vmatpush.bf16.msra.mxu0 0
    %513 = vmatpush.bf16.msra.mxu0 0
    %514 = vmatpush.bf16.msra.mxu0 0
    %515 = vmatpush.bf16.msra.mxu0 0
    %516 = vmatpush.bf16.msra.mxu0 0
    %517 = vmatpush.bf16.msra.mxu0 0
    %518 = vmatpush.bf16.msra.mxu0 %v477
    %519 = vmatmul.bf16.gmra.mxu0 %v509
    %v520 = vpop.f32.mrf.mxu0
    %v521 = vadd.f32 0.0, %v520
    %v522 = vpop.f32.mrf.mxu0
    %523 = vdwg.mxu0
    %v524 = vunpack.c.l.b16 %v177
    %v525 = vpack.c.b16 %v524, %v524
    %526 = vrot.lane.b32.xlu0 %v525, 80
    %v527 = vpop.permute.xlu0 %526
    %v529 = vsel %vm84, %v441, 0
    %v532 = vsel %vm452, %v527, 0
    %534 = vmatpush.bf16.msra.mxu0 0
    %535 = vmatpush.bf16.msra.mxu0 0
    %536 = vmatpush.bf16.msra.mxu0 0
    %537 = vmatpush.bf16.msra.mxu0 0
    %538 = vmatpush.bf16.msra.mxu0 0
    %539 = vmatpush.bf16.msra.mxu0 0
    %540 = vmatpush.bf16.msra.mxu0 0
    %541 = vmatpush.bf16.msra.mxu0 %v532
    %542 = vmatmul.bf16.gmra.mxu0 %v529
    %v543 = vpop.f32.mrf.mxu0
    %v544 = vadd.f32 0.0, %v543
    %v545 = vpop.f32.mrf.mxu0
    %546 = vdwg.mxu0
    %v547 = vunpack.c.l.b16 %v179
    %v548 = vpack.c.b16 %v547, %v547
    %549 = vrot.lane.b32.xlu0 %v548, 80
    %v550 = vpop.permute.xlu0 %549
    %v552 = vsel %vm84, %v442, 0
    %v555 = vsel %vm452, %v550, 0
    %557 = vmatpush.bf16.msra.mxu0 0
    %558 = vmatpush.bf16.msra.mxu0 0
    %559 = vmatpush.bf16.msra.mxu0 0
    %560 = vmatpush.bf16.msra.mxu0 0
    %561 = vmatpush.bf16.msra.mxu0 0
    %562 = vmatpush.bf16.msra.mxu0 0
    %563 = vmatpush.bf16.msra.mxu0 0
    %564 = vmatpush.bf16.msra.mxu0 %v555
    %565 = vmatmul.bf16.gmra.mxu0 %v552
    %v566 = vpop.f32.mrf.mxu0
    %v567 = vadd.f32 0.0, %v566
    %v568 = vpop.f32.mrf.mxu0
    %569 = vdwg.mxu0
    %v571 = vsel %vm84, %v443, 0
    %573 = vmatpush.bf16.msra.mxu0 0
    %574 = vmatpush.bf16.msra.mxu0 0
    %575 = vmatpush.bf16.msra.mxu0 0
    %576 = vmatpush.bf16.msra.mxu0 0
    %577 = vmatpush.bf16.msra.mxu0 0
    %578 = vmatpush.bf16.msra.mxu0 0
    %579 = vmatpush.bf16.msra.mxu0 0
    %580 = vmatpush.bf16.msra.mxu0 %v532
    %581 = vmatmul.bf16.gmra.mxu0 %v571
    %v582 = vpop.f32.mrf.mxu0
    %v583 = vadd.f32 0.0, %v582
    %v584 = vpop.f32.mrf.mxu0
    %585 = vdwg.mxu0
    %v587 = vsel %vm84, %v444, 0
    %589 = vmatpush.bf16.msra.mxu0 0
    %590 = vmatpush.bf16.msra.mxu0 0
    %591 = vmatpush.bf16.msra.mxu0 0
    %592 = vmatpush.bf16.msra.mxu0 0
    %593 = vmatpush.bf16.msra.mxu0 0
    %594 = vmatpush.bf16.msra.mxu0 0
    %595 = vmatpush.bf16.msra.mxu0 0
    %596 = vmatpush.bf16.msra.mxu0 %v555
    %597 = vmatmul.bf16.gmra.mxu0 %v587
    %v598 = vpop.f32.mrf.mxu0
    %v599 = vadd.f32 0.0, %v598
    %v600 = vpop.f32.mrf.mxu0
    %601 = vdwg.mxu0
    %604 = vrot.lane.b32.xlu0 %v505, 8
    %v605 = vpop.permute.xlu0 %604
    %606 = vrot.lane.b32.xlu0 %v521, 8
    %v607 = vpop.permute.xlu0 %606
    %612 = vrot.lane.b32.xlu0 %v544, 16
    %v613 = vpop.permute.xlu0 %612
    %614 = vrot.lane.b32.xlu0 %v567, 16
    %v615 = vpop.permute.xlu0 %614
    %620 = vrot.lane.b32.xlu0 %v583, 24
    %v621 = vpop.permute.xlu0 %620
    %622 = vrot.lane.b32.xlu0 %v599, 24
    %v623 = vpop.permute.xlu0 %622
    %v626 = vsel %vm84, %v466, %v605
    %v627 = vsel %vm84, %v489, %v607
    %v628 = vsel %vm90, %v626, %v613
    %v629 = vsel %vm90, %v627, %v615
    %v630 = vsel %vm96, %v628, %v621
    %v631 = vsel %vm96, %v629, %v623
    %v632 = vpack.c.bf16 %v631, %v630
    %v633 = vld [vmem:[%s2] sm:$0xf]
    %v634 = vld [vmem:[%s2 + $0x4] sm:$0xf]
    %v635 = vld [vmem:[%s2 + $0x8] sm:$0xf]
    %v636 = vld [vmem:[%s2 + $0xc] sm:$0xf]
    %v641 = vunpack.c.l.b16 %v633
    %v642 = vunpack.c.l.b16 %v634
    %v643 = vunpack.c.l.b16 %v635
    %v644 = vunpack.c.l.b16 %v636
    %v645 = vpack.c.b16 %v642, %v641
    %v646 = vpack.c.b16 %v644, %v643
    %v650 = vsel %vm45, %v632, 0
    %652 = vmatpush.bf16.msra.mxu0 0
    %653 = vmatpush.bf16.msra.mxu0 0
    %654 = vmatpush.bf16.msra.mxu0 0
    %655 = vmatpush.bf16.msra.mxu0 0
    %656 = vmatpush.bf16.msra.mxu0 0
    %657 = vmatpush.bf16.msra.mxu0 0
    %658 = vmatpush.bf16.msra.mxu0 %v646
    %659 = vmatpush.bf16.msra.mxu0 %v645
    %660 = vmatmul.bf16.gmra.mxu0 %v650
    %v661 = vpop.f32.mrf.mxu0
    %v662 = vadd.f32 0.0, %v661
    %v663 = vpop.f32.mrf.mxu0
    %v664 = vadd.f32 0.0, %v663
    %665 = vdwg.mxu0
    %666 = vst.msk [vmem:[#allocation2] sm:$0xff] %vm45, %v662
    %667 = vst.msk [vmem:[#allocation2 + $0x8] sm:$0xff] %vm45, %v664
    // Predicated region
    $region22: #{gqa_forward.1} parent=1 // pred_check
      _
    $region23: #{gqa_forward.1} parent=1 // pred_check_branch
      %669 = sbr.rel (0) target = $region25
    $region24: #{gqa_forward.1} parent=1 // pred_region
      %671 = vsyncadd [#allocation3], 0
      %s672 = sshll.u32 [#allocation2], 4
      %s673 = int_to_ptr.vmem [resolvable:$true] %s672
      %s674 = sshll.u32 %s5, 4
      %s675 = int_to_ptr.hbm [resolvable:$true] %s674
      %680 = dma.vmem_to_hbm [thread:$0]  %s673, 256, %s675, [#allocation3], 128, 128, 8
    $region25: #{gqa_forward.1} parent=1 // pred_fallthru
      _
    // Predicated region
    $region26: #{gqa_forward.1} parent=1 // pred_check
      _
    $region27: #{gqa_forward.1} parent=1 // pred_check_branch
      %682 = sbr.rel (0) target = $region29
    $region28: #{gqa_forward.1} parent=1 // pred_region
      %684 = dma.done [#allocation3], 256
    $region29: #{gqa_forward.1} parent=1 // pred_fallthru
      _
    %685 = vsyncpa [#allocation3], 1

</llo_original>
